<compile_context>
chip_gen: v5e
topology: v5e:2x2
jax: 0.10.0
libtpu: 0.0.40
codegen_flags: <defaults>
</compile_context>

<pallas_src>
import jax
import jax.numpy as jnp
from jax.experimental import pallas as pl
from jax.experimental.pallas import tpu as pltpu

EPS = 1e-5  # PyTorch BatchNorm1d default


def densebn_kernel(x_ref, wt_ref, gb_ref, o_ref):
    # x:  (N, inc)      resident across all grid steps (constant index_map)
    # wt: (inc, T_OUC)  per-tile pre-transposed weight (lane-dense along ouc)
    # gb: (2, T_OUC)    row 0 = gamma, row 1 = beta
    # o:  (N, T_OUC)    per-tile output
    # Linear (bias dropped -- it cancels exactly under batch-norm): bf16 MXU matmul
    # with f32 accumulation.
    z = jnp.dot(x_ref[...], wt_ref[...], preferred_element_type=jnp.float32)

    # BatchNorm1d, training mode: biased per-channel batch statistics over the full
    # batch, computed in one pass (sum and sum-of-squares are independent sublane
    # reductions, so they overlap in the XLU).
    inv_n = 1.0 / z.shape[0]
    mean = jnp.sum(z, axis=0, keepdims=True) * inv_n                    # (1, T_OUC)
    var = jnp.sum(z * z, axis=0, keepdims=True) * inv_n - mean * mean   # biased var
    gamma = gb_ref[0:1, :]
    beta = gb_ref[1:2, :]
    scale = gamma * jax.lax.rsqrt(var + EPS)       # fold gamma into the scale
    shift = beta - mean * scale                    # fused affine: y = z*scale + shift
    y = z * scale + shift

    # Exact sigmoid via a single EUP op: sigmoid(y) = 0.5 * tanh(0.5 * y) + 0.5.
    o_ref[...] = (0.5 * jnp.tanh(0.5 * y) + 0.5).astype(o_ref.dtype)

    # TODO(synk): PyTorch BatchNorm1d also updates running_mean/running_var as a
    # training-time side effect; that buffer mutation is not part of the forward
    # output and is not emitted here.


def _working_set_bytes(N, inc, t_ouc, in_elt, out_elt):
    """Estimated per-step VMEM working set (all auto-pipelined blocks double-buffered)."""
    return (2 * N * inc * in_elt         # resident x (double-buffer allocation)
            + 2 * inc * t_ouc * in_elt   # weight tile
            + 2 * 2 * t_ouc * 4          # gamma/beta tile
            + 2 * N * t_ouc * out_elt    # output tile
            + 4 * N * t_ouc * 4)         # f32 z/y intermediates + headroom


def _pick_t_ouc(N, inc, ouc_p, in_elt, out_elt, budget_bytes):
    """Largest lane-dense ouc tile (prefer 256-multiples) whose working set fits."""
    cands = [t for t in range(128, ouc_p + 1, 128) if ouc_p % t == 0]
    cands.sort(key=lambda t: (t % 256 != 0, -t))   # 256-multiples first, then bigger
    for t in cands:
        if _working_set_bytes(N, inc, t, in_elt, out_elt) <= budget_bytes:
            return t
    return 128


def dense_bn(x, w, b, gamma, beta, *, t_ouc=None,
             compute_dtype=jnp.bfloat16, out_dtype=jnp.float32):
    """x: (N, inc); w: (ouc, inc); b/gamma/beta: (ouc,).

    Returns sigmoid(BatchNorm1d(x @ w.T + b)) with training-mode (batch) statistics.
    """
    N, inc = x.shape
    ouc = w.shape[0]
    del b  # Linear bias cancels exactly under training-mode BatchNorm (mean(z+b)=mean(z)+b).

    # Pad ouc to a multiple of 128 so every output tile is lane-dense (unmasked vst).
    ouc_p = ((ouc + 127) // 128) * 128
    pad = ouc_p - ouc

    # Pre-transpose the weight once in the wrapper -> (inc, ouc_p); cast matmul
    # operands to bf16 (fast MXU path, half the DMA bytes). BN params stay f32.
    w_t = jnp.transpose(w).astype(compute_dtype)
    x_c = x.astype(compute_dtype)
    gb = jnp.stack([gamma, beta]).astype(jnp.float32)          # (2, ouc)
    if pad:
        w_t = jnp.pad(w_t, ((0, 0), (0, pad)))
        gb = jnp.pad(gb, ((0, 0), (0, pad)), constant_values=1.0)

    in_elt = jnp.dtype(compute_dtype).itemsize
    out_elt = jnp.dtype(out_dtype).itemsize
    # ~40 MiB working-set budget: fits v7x's 64 MiB/TC with headroom; v5e/v6e
    # (128 MiB) simply get large tiles / few grid steps.
    budget = 40 * 1024 * 1024
    if t_ouc is None:
        t_ouc = _pick_t_ouc(N, inc, ouc_p, in_elt, out_elt, budget)
    assert ouc_p % t_ouc == 0 and t_ouc % 128 == 0, "t_ouc must be a 128-multiple dividing padded ouc"
    grid = (ouc_p // t_ouc,)

    ws = _working_set_bytes(N, inc, t_ouc, in_elt, out_elt)
    vmem_limit = int(min(48 * 1024 * 1024, max(16 * 1024 * 1024, 2 * ws)))

    cost = pl.CostEstimate(
        flops=2 * N * inc * ouc_p + 10 * N * ouc_p,
        transcendentals=N * ouc_p,                       # one tanh per output element
        bytes_accessed=(x_c.size * in_elt + w_t.size * in_elt
                        + gb.size * 4 + N * ouc_p * out_elt),
    )

    out = pl.pallas_call(
        densebn_kernel,
        out_shape=jax.ShapeDtypeStruct((N, ouc_p), out_dtype),
        grid=grid,
        in_specs=[
            # x: same block every step -> stays resident in VMEM, no re-DMA.
            # TODO(synk): pipeline_mode=pl.Buffered(1) would drop x to a single buffer;
            # left at the default for compatibility (the budget accounts for 2 buffers).
            pl.BlockSpec((N, inc), lambda j: (0, 0)),
            # Per-step weight slice (lane-dense along ouc), double-buffered by Pallas.
            pl.BlockSpec((inc, t_ouc), lambda j: (0, j)),
            # gamma/beta stacked -> one small DMA per step instead of two/three.
            pl.BlockSpec((2, t_ouc), lambda j: (0, j)),
        ],
        out_specs=pl.BlockSpec((N, t_ouc), lambda j: (0, j)),
        compiler_params=pltpu.CompilerParams(
            dimension_semantics=("parallel",),   # ouc tiles shard across v7x's 2 TCs
            vmem_limit_bytes=vmem_limit,
        ),
        cost_estimate=cost,
    )(x_c, w_t, gb)

    return out[:, :ouc] if pad else out


def dense_bn_ref(x, w, b, gamma, beta):
    z = x @ w.T + b
    mean = jnp.mean(z, axis=0, keepdims=True)
    var = jnp.mean((z - mean) ** 2, axis=0, keepdims=True)
    y = (z - mean) / jnp.sqrt(var + EPS) * gamma + beta
    return jax.nn.sigmoid(y)


if __name__ == "__main__":
    # Small shapes; batch must be > 1 for BatchNorm1d training-mode stats.
    N, INC, OUC = 8, 32, 256

    key = jax.random.PRNGKey(0)
    kx, kw, kb, kg, kbe = jax.random.split(key, 5)

    x = jax.random.normal(kx, (N, INC), dtype=jnp.float32)
    # Parameter shapes follow nn.Linear(inc, ouc) + nn.BatchNorm1d(ouc).
    w = jax.random.normal(kw, (OUC, INC), dtype=jnp.float32) * (1.0 / jnp.sqrt(INC))
    b = jax.random.normal(kb, (OUC,), dtype=jnp.float32) * 0.1
    gamma = 1.0 + 0.1 * jax.random.normal(kg, (OUC,), dtype=jnp.float32)
    beta = 0.1 * jax.random.normal(kbe, (OUC,), dtype=jnp.float32)

    # t_ouc=128 -> grid=(2,): exercises the tiled/parallel path even at demo size.
    out = dense_bn(x, w, b, gamma, beta, t_ouc=128)
    out = jax.block_until_ready(out)

    ref = dense_bn_ref(x, w, b, gamma, beta)
    assert out.shape == (N, OUC)
    # Sigmoid/BN math is exact (no approx reciprocal); tolerance only absorbs the
    # bf16 matmul operands (f32 accumulation). Outputs are bounded in [0, 1].
    assert jnp.allclose(out, ref, atol=2e-2, rtol=2e-2), "mismatch vs reference"

    print("KERNEL_OK")
</pallas_src>

<mosaic_0001>
module attributes {stable_mosaic.version = 11 : i64} {
  func.func @densebn_kernel(%arg0: i32, %arg1: memref<8x32xbf16, #tpu.memory_space<vmem>>, %arg2: memref<32x128xbf16, #tpu.memory_space<vmem>>, %arg3: memref<2x128xf32, #tpu.memory_space<vmem>>, %arg4: memref<8x128xf32, #tpu.memory_space<vmem>>) attributes {dimension_semantics = [#tpu.dimension_semantics<parallel>], iteration_bounds = array<i64: 2>, scalar_prefetch = 0 : i64, scratch_operands = 0 : i64, tpu.core_type = #tpu.core_type<tc>, window_params = [{pipeline_mode = #tpu.pipeline_mode<synchronous>, transform_indices = @transform_0, window_bounds = array<i64: 8, 32>}, {transform_indices = @transform_1, window_bounds = array<i64: 32, 128>}, {transform_indices = @transform_2, window_bounds = array<i64: 2, 128>}, {transform_indices = @transform_3, window_bounds = array<i64: 8, 128>}]} {
    %c0 = arith.constant 0 : index
    %c0_0 = arith.constant 0 : index
    %0 = vector.load %arg1[%c0, %c0_0] : memref<8x32xbf16, #tpu.memory_space<vmem>>, vector<8x32xbf16>
    %c0_1 = arith.constant 0 : index
    %c0_2 = arith.constant 0 : index
    %1 = vector.load %arg2[%c0_1, %c0_2] : memref<32x128xbf16, #tpu.memory_space<vmem>>, vector<32x128xbf16>
    %cst = arith.constant dense<0.000000e+00> : vector<8x128xf32>
    %2 = tpu.matmul %0, %1, %cst {dimension_numbers = #tpu.dot_dimension_numbers<[1], [0], [0], [1], [0, 0, 1, 1], [], []>} : vector<8x32xbf16>, vector<32x128xbf16>, vector<8x128xf32> -> vector<8x128xf32>
    %cst_3 = arith.constant dense<0.000000e+00> : vector<128xf32>
    %3 = vector.multi_reduction <add>, %2, %cst_3 [0] : vector<8x128xf32> to vector<128xf32>
    %4 = vector.shape_cast %3 : vector<128xf32> to vector<1x128xf32>
    %cst_4 = arith.constant 1.250000e-01 : f32
    %5 = vector.broadcast %cst_4 : f32 to vector<1x128xf32>
    %6 = arith.mulf %4, %5 : vector<1x128xf32>
    %7 = arith.mulf %2, %2 : vector<8x128xf32>
    %cst_5 = arith.constant dense<0.000000e+00> : vector<128xf32>
    %8 = vector.multi_reduction <add>, %7, %cst_5 [0] : vector<8x128xf32> to vector<128xf32>
    %9 = vector.shape_cast %8 : vector<128xf32> to vector<1x128xf32>
    %cst_6 = arith.constant 1.250000e-01 : f32
    %10 = vector.broadcast %cst_6 : f32 to vector<1x128xf32>
    %11 = arith.mulf %9, %10 : vector<1x128xf32>
    %12 = arith.mulf %6, %6 : vector<1x128xf32>
    %13 = arith.subf %11, %12 : vector<1x128xf32>
    %c0_7 = arith.constant 0 : index
    %c0_8 = arith.constant 0 : index
    %14 = vector.load %arg3[%c0_7, %c0_8] : memref<2x128xf32, #tpu.memory_space<vmem>>, vector<1x128xf32>
    %c1 = arith.constant 1 : index
    %c0_9 = arith.constant 0 : index
    %15 = vector.load %arg3[%c1, %c0_9] : memref<2x128xf32, #tpu.memory_space<vmem>>, vector<1x128xf32>
    %cst_10 = arith.constant 9.99999974E-6 : f32
    %16 = vector.broadcast %cst_10 : f32 to vector<1x128xf32>
    %17 = arith.addf %13, %16 : vector<1x128xf32>
    %18 = math.rsqrt %17 : vector<1x128xf32>
    %19 = arith.mulf %14, %18 : vector<1x128xf32>
    %20 = arith.mulf %6, %19 : vector<1x128xf32>
    %21 = arith.subf %15, %20 : vector<1x128xf32>
    %22 = vector.broadcast %19 : vector<1x128xf32> to vector<8x128xf32>
    %23 = arith.mulf %2, %22 : vector<8x128xf32>
    %24 = vector.broadcast %21 : vector<1x128xf32> to vector<8x128xf32>
    %25 = arith.addf %23, %24 : vector<8x128xf32>
    %cst_11 = arith.constant 5.000000e-01 : f32
    %26 = vector.broadcast %cst_11 : f32 to vector<8x128xf32>
    %27 = arith.mulf %26, %25 : vector<8x128xf32>
    %28 = math.tanh %27 : vector<8x128xf32>
    %cst_12 = arith.constant 5.000000e-01 : f32
    %29 = vector.broadcast %cst_12 : f32 to vector<8x128xf32>
    %30 = arith.mulf %29, %28 : vector<8x128xf32>
    %cst_13 = arith.constant 5.000000e-01 : f32
    %31 = vector.broadcast %cst_13 : f32 to vector<8x128xf32>
    %32 = arith.addf %30, %31 : vector<8x128xf32>
    %c0_14 = arith.constant 0 : index
    %c0_15 = arith.constant 0 : index
    %33 = vector.load %arg4[%c0_14, %c0_15] : memref<8x128xf32, #tpu.memory_space<vmem>>, vector<8x128xf32>
    tpu.vector_store %arg4[%c0_14, %c0_15], %32 {strides = array<i32>} : memref<8x128xf32, #tpu.memory_space<vmem>>, vector<8x128xf32>,
    return
  }
  func.func @transform_0(%arg0: i32) -> (i32, i32) {
    %c0_i32 = arith.constant 0 : i32
    %c0_i32_0 = arith.constant 0 : i32
    %c0_i32_1 = arith.constant 0 : i32
    return %c0_i32, %c0_i32_0 : i32, i32
  }
  func.func @transform_1(%arg0: i32) -> (i32, i32) {
    %c0_i32 = arith.constant 0 : i32
    %c0_i32_0 = arith.constant 0 : i32
    return %c0_i32, %arg0 : i32, i32
  }
  func.func @transform_2(%arg0: i32) -> (i32, i32) {
    %c0_i32 = arith.constant 0 : i32
    %c0_i32_0 = arith.constant 0 : i32
    return %c0_i32, %arg0 : i32, i32
  }
  func.func @transform_3(%arg0: i32) -> (i32, i32) {
    %c0_i32 = arith.constant 0 : i32
    %c0_i32_0 = arith.constant 0 : i32
    return %c0_i32, %arg0 : i32, i32
  }
}

</mosaic_0001>

<llo_original>
// kernel: tpu_custom_call.1
$region0: #{tpu_custom_call.1}
  #allocation0 [shape = 'u32[]', space=smem, size = 0x4, offset = 0x4, fixed_abs, tag = 'smem constant byte address 0x4 - core index']
  #allocation1 [shape = 'u32[72,128]{1,0:T(1,128)}', space=vmem, size = 0x9000, scoped, tag = 'internal scratch']
  %s0 = inlined_call_operand.hbm [shape: bf16[8,32], index: 0, kind: input, shape index: {}]
  %s1 = inlined_call_operand.hbm [shape: bf16[32,256], index: 1, kind: input, shape index: {}]
  %s2 = inlined_call_operand.hbm [shape: f32[2,256], index: 2, kind: input, shape index: {}]
  %s3 = inlined_call_operand.hbm [shape: f32[8,256], index: 3, kind: output, shape index: {}]
  %s4 = sld [smem:[#allocation0]]
  $region57: #{tpu_custom_call.1} parent=0
    _
  %s6 = ssub.s32 1, %s4
  %s7 = scalar_select 0, %s6, %s4
  $region1: #{tpu_custom_call.1} parent=0
    #allocation2 [shape = 'u8[2048]{0}', space=vmem, size = 0x800, scoped, tag = 'input window, operand 0, single buffered']
    #allocation3 [shape = 's32[2]{0}', space=sflag, size = 0x8, scoped, tag = 'scoped memory for tpu_custom_call.1']
    #allocation4 [shape = 's32[2]{0}', space=sflag, size = 0x8, scoped, tag = 'scoped memory for tpu_custom_call.1']
    #allocation5 [shape = 'u8[16384]{0}', space=vmem, size = 0x4000, scoped, tag = 'input window, operand 1']
    #allocation6 [shape = 's32[2]{0}', space=sflag, size = 0x8, scoped, tag = 'scoped memory for tpu_custom_call.1']
    #allocation7 [shape = 'u8[2048]{0}', space=vmem, size = 0x800, scoped, tag = 'input window, operand 2']
    #allocation8 [shape = 'u8[8192]{0}', space=vmem, size = 0x2000, scoped, tag = 'output window, operand 0']
    %8 = vsyncpa [#allocation3], 0
    %9 = vsyncpa [#allocation6], 0
    %s10 = scalar_lea.sflag [#allocation6], 1
    %11 = vsyncpa %s10, 0
    %12 = vsyncpa [#allocation4], 0
    %s13 = scalar_lea.sflag [#allocation4], 1
    %14 = vsyncpa %s13, 0
    loop: start=0, step=1, limit=4
    $region2: #{tpu_custom_call.1} parent=1 // loop_pre_header
      _
    $region3: #{tpu_custom_call.1} parent=1 // loop_header
      %s16 = sphi 0, %s20
      %p17 = scmp.ge.s32.totalorder %s16, 4
      %s24 = sphi 0, %s24
      %s26 = sphi 0, %s24
      %s27 = sphi 0, %s26
      %s41 = sphi 0, %s27
      %s47 = sphi 0, %s49
      %s50 = sphi 0, %s47
      %s51 = sphi 0, %s50
      %s67 = sphi 0, %s51
      %s73 = sphi 0, %s75
      %s76 = sphi 0, %s73
      %s77 = sphi 0, %s76
      %s93 = sphi 0, %s77
      %s99 = sphi 0, %s101
      %s102 = sphi 0, %s99
      %s103 = sphi 0, %s102
      %s119 = sphi 0, %s103
    $region4: #{tpu_custom_call.1} parent=1 // loop_header_branch
      %19 = sbr.rel (%p17) target = $region8
    $region5: #{tpu_custom_call.1} parent=1 // loop_body
      %s21 = ssub.s32 %s16, 1
      %s22 = ssub.s32 %s16, 2
      %s23 = sadd.s32 %s16, 1
      %s25 = sadd.s32 %s24, 1
      %p28 = scmp.eq.s32.totalorder %s16, 1
      %p29 = scmp.ne.s32.totalorder %s24, %s26
      %p30 = scmp.eq.s32.totalorder %s16, 0
      %p31 = por %p29, %p30
      %p32 = scmp.ne.s32.totalorder %s24, %s26
      %p33 = scmp.eq.s32.totalorder %s21, 1
      %p34 = por %p32, %p33
      %p35 = scmp.ne.s32.totalorder %s26, %s27
      %p36 = scmp.eq.s32.totalorder %s21, 0
      %p37 = por %p35, %p36
      %p38 = scmp.ne.s32.totalorder %s26, %s27
      %p39 = scmp.eq.s32.totalorder %s22, 1
      %p40 = por %p38, %p39
      %p42 = scmp.ne.s32.totalorder %s27, %s41
      %p43 = scmp.eq.s32.totalorder %s22, 0
      %p44 = por %p42, %p43
      %s45 = ssub.s32 %s16, %s23
      %p46 = scmp.eq.s32.totalorder %s45, 0
      %s48 = sadd.s32 %s47, 1
      %s49 = scalar_select %p46, %s47, %s48
      %p52 = pneg %p46
      %p53 = scmp.eq.s32.totalorder %s16, 1
      %p54 = por %p52, %p53
      %p55 = scmp.ne.s32.totalorder %s47, %s50
      %p56 = scmp.eq.s32.totalorder %s16, 0
      %p57 = por %p55, %p56
      %p58 = scmp.ne.s32.totalorder %s47, %s50
      %p59 = scmp.eq.s32.totalorder %s21, 1
      %p60 = por %p58, %p59
      %p61 = scmp.ne.s32.totalorder %s50, %s51
      %p62 = scmp.eq.s32.totalorder %s21, 0
      %p63 = por %p61, %p62
      %p64 = scmp.ne.s32.totalorder %s50, %s51
      %p65 = scmp.eq.s32.totalorder %s22, 1
      %p66 = por %p64, %p65
      %p68 = scmp.ne.s32.totalorder %s51, %s67
      %p69 = scmp.eq.s32.totalorder %s22, 0
      %p70 = por %p68, %p69
      %s71 = ssub.s32 %s16, %s23
      %p72 = scmp.eq.s32.totalorder %s71, 0
      %s74 = sadd.s32 %s73, 1
      %s75 = scalar_select %p72, %s73, %s74
      %p78 = pneg %p72
      %p79 = scmp.eq.s32.totalorder %s16, 1
      %p80 = por %p78, %p79
      %p81 = scmp.ne.s32.totalorder %s73, %s76
      %p82 = scmp.eq.s32.totalorder %s16, 0
      %p83 = por %p81, %p82
      %p84 = scmp.ne.s32.totalorder %s73, %s76
      %p85 = scmp.eq.s32.totalorder %s21, 1
      %p86 = por %p84, %p85
      %p87 = scmp.ne.s32.totalorder %s76, %s77
      %p88 = scmp.eq.s32.totalorder %s21, 0
      %p89 = por %p87, %p88
      %p90 = scmp.ne.s32.totalorder %s76, %s77
      %p91 = scmp.eq.s32.totalorder %s22, 1
      %p92 = por %p90, %p91
      %p94 = scmp.ne.s32.totalorder %s77, %s93
      %p95 = scmp.eq.s32.totalorder %s22, 0
      %p96 = por %p94, %p95
      %s97 = ssub.s32 %s16, %s23
      %p98 = scmp.eq.s32.totalorder %s97, 0
      %s100 = sadd.s32 %s99, 1
      %s101 = scalar_select %p98, %s99, %s100
      %p104 = pneg %p98
      %p105 = scmp.eq.s32.totalorder %s16, 1
      %p106 = por %p104, %p105
      %p107 = scmp.ne.s32.totalorder %s99, %s102
      %p108 = scmp.eq.s32.totalorder %s16, 0
      %p109 = por %p107, %p108
      %p110 = scmp.ne.s32.totalorder %s99, %s102
      %p111 = scmp.eq.s32.totalorder %s21, 1
      %p112 = por %p110, %p111
      %p113 = scmp.ne.s32.totalorder %s102, %s103
      %p114 = scmp.eq.s32.totalorder %s21, 0
      %p115 = por %p113, %p114
      %p116 = scmp.ne.s32.totalorder %s102, %s103
      %p117 = scmp.eq.s32.totalorder %s22, 1
      %p118 = por %p116, %p117
      %p120 = scmp.ne.s32.totalorder %s103, %s119
      %p121 = scmp.eq.s32.totalorder %s22, 0
      %p122 = por %p120, %p121
      %p123 = scmp.le.s32.totalorder 1, %s16
      %p124 = scmp.lt.s32.totalorder %s16, 3
      %p125 = pnand %p123, %p124
      %p126 = pneg %p125
      // Predicated region
      $region9: #{tpu_custom_call.1} parent=5 // pred_check
        _
      $region10: #{tpu_custom_call.1} parent=5 // pred_check_branch
        %128 = sbr.rel (%p125) target = $region12
      $region11: #{tpu_custom_call.1} parent=5 // pred_region
        %s129 = ssub.s32 %s16, 1
        // Predicated region
        $region13: #{tpu_custom_call.1} parent=11 // pred_check
          %p130 = pneg %p37
        $region14: #{tpu_custom_call.1} parent=11 // pred_check_branch
          %132 = sbr.rel (%p130) target = $region16
        $region15: #{tpu_custom_call.1} parent=11 // pred_region
          %134 = vsyncadd [#allocation3], 0
          %s136 = sshll.u32 %s0, 4
          %s137 = int_to_ptr.hbm [resolvable:$true] %s136
          %s138 = sshll.u32 [#allocation2], 4
          %s139 = int_to_ptr.vmem [resolvable:$true] %s138
          %141 = dma.hbm_to_vmem [thread:$0]  %s137, 64, %s139, [#allocation3]
        $region16: #{tpu_custom_call.1} parent=11 // pred_fallthru
          _
      $region12: #{tpu_custom_call.1} parent=5 // pred_fallthru
        _
      %p142 = scmp.lt.s32.totalorder %s16, 2
      // Predicated region
      $region17: #{tpu_custom_call.1} parent=5 // pred_check
        %p143 = pneg %p142
      $region18: #{tpu_custom_call.1} parent=5 // pred_check_branch
        %145 = sbr.rel (%p143) target = $region20
      $region19: #{tpu_custom_call.1} parent=5 // pred_region
        // Predicated region
        $region21: #{tpu_custom_call.1} parent=19 // pred_check
          %p146 = pneg %p57
        $region22: #{tpu_custom_call.1} parent=19 // pred_check_branch
          %148 = sbr.rel (%p146) target = $region24
        $region23: #{tpu_custom_call.1} parent=19 // pred_region
          %s149 = sand.u32 %s16, 1
          %s150 = scalar_lea.sflag [#allocation6], %s149
          %s151 = sand.u32 %s47, 1
          %s152 = smul.addr %s151, 16
          %s153 = scalar_lea.vmem [#allocation5], %s152
          %155 = vsyncadd %s150, 0
          %s156 = smul.addr %s16, 4
          %s157 = scalar_lea.hbm %s1, %s156
          %s158 = sshll.u32 %s157, 4
          %s159 = int_to_ptr.hbm [resolvable:$true] %s158
          %s160 = sshll.u32 %s153, 4
          %s161 = int_to_ptr.vmem [resolvable:$true] %s160
          %166 = dma.hbm_to_vmem [thread:$0]  %s159, 256, %s161, %s150, 128, 64, 4
        $region24: #{tpu_custom_call.1} parent=19 // pred_fallthru
          _
        // Predicated region
        $region25: #{tpu_custom_call.1} parent=19 // pred_check
          %p167 = pneg %p83
        $region26: #{tpu_custom_call.1} parent=19 // pred_check_branch
          %169 = sbr.rel (%p167) target = $region28
        $region27: #{tpu_custom_call.1} parent=19 // pred_region
          %s170 = sand.u32 %s16, 1
          %s171 = scalar_lea.sflag [#allocation6], %s170
          %s172 = sand.u32 %s73, 1
          %s173 = smul.addr %s172, 2
          %s174 = scalar_lea.vmem [#allocation7], %s173
          %176 = vsyncadd %s171, 0
          %s177 = smul.addr %s16, 2
          %s178 = scalar_lea.hbm %s2, %s177
          %s180 = sshll.u32 %s178, 4
          %s181 = int_to_ptr.hbm [resolvable:$true] %s180
          %s182 = sshll.u32 %s174, 4
          %s183 = int_to_ptr.vmem [resolvable:$true] %s182
          %185 = dma.hbm_to_vmem [thread:$0]  %s181, 32, %s183, %s171
        $region28: #{tpu_custom_call.1} parent=19 // pred_fallthru
          _
      $region20: #{tpu_custom_call.1} parent=5 // pred_fallthru
        _
      %p186 = scmp.le.s32.totalorder 1, %s16
      %p187 = scmp.lt.s32.totalorder %s16, 3
      %p188 = pnand %p186, %p187
      %p189 = pneg %p188
      // Predicated region
      $region29: #{tpu_custom_call.1} parent=5 // pred_check
        _
      $region30: #{tpu_custom_call.1} parent=5 // pred_check_branch
        %191 = sbr.rel (%p188) target = $region32
      $region31: #{tpu_custom_call.1} parent=5 // pred_region
        %s192 = ssub.s32 %s16, 1
        // Predicated region
        $region33: #{tpu_custom_call.1} parent=31 // pred_check
          %p193 = pneg %p37
        $region34: #{tpu_custom_call.1} parent=31 // pred_check_branch
          %195 = sbr.rel (%p193) target = $region36
        $region35: #{tpu_custom_call.1} parent=31 // pred_region
          %197 = dma.done [#allocation3], 64
        $region36: #{tpu_custom_call.1} parent=31 // pred_fallthru
          _
        %s198 = sand.u32 %s21, 1
        %s199 = scalar_lea.sflag [#allocation6], %s198
        %s200 = sand.u32 %s50, 1
        %s201 = smul.addr %s200, 16
        %s202 = scalar_lea.vmem [#allocation5], %s201
        // Predicated region
        $region37: #{tpu_custom_call.1} parent=31 // pred_check
          %p203 = pneg %p63
        $region38: #{tpu_custom_call.1} parent=31 // pred_check_branch
          %205 = sbr.rel (%p203) target = $region40
        $region39: #{tpu_custom_call.1} parent=31 // pred_region
          %207 = dma.done %s199, 256
        $region40: #{tpu_custom_call.1} parent=31 // pred_fallthru
          _
        %s208 = sand.u32 %s21, 1
        %s209 = scalar_lea.sflag [#allocation6], %s208
        %s210 = sand.u32 %s76, 1
        %s211 = smul.addr %s210, 2
        %s212 = scalar_lea.vmem [#allocation7], %s211
        // Predicated region
        $region41: #{tpu_custom_call.1} parent=31 // pred_check
          %p213 = pneg %p89
        $region42: #{tpu_custom_call.1} parent=31 // pred_check_branch
          %215 = sbr.rel (%p213) target = $region44
        $region43: #{tpu_custom_call.1} parent=31 // pred_region
          %217 = dma.done %s209, 32
        $region44: #{tpu_custom_call.1} parent=31 // pred_fallthru
          _
        %p218 = pneg %p37
        %p219 = pneg %p34
        %s220 = sand.u32 %s21, 1
        %s221 = scalar_lea.sflag [#allocation6], %s220
        %s222 = sand.u32 %s50, 1
        %s223 = smul.addr %s222, 16
        %s224 = scalar_lea.vmem [#allocation5], %s223
        %p225 = pneg %p63
        %p226 = pneg %p60
        %s227 = sand.u32 %s21, 1
        %s228 = scalar_lea.sflag [#allocation6], %s227
        %s229 = sand.u32 %s76, 1
        %s230 = smul.addr %s229, 2
        %s231 = scalar_lea.vmem [#allocation7], %s230
        %p232 = pneg %p89
        %p233 = pneg %p86
        %p234 = pneg %p115
        %p235 = pneg %p112
        %s236 = sand.u32 %s102, 1
        %s237 = scalar_lea.sflag [#allocation4], %s236
        %s238 = sand.u32 %s102, 1
        %s239 = smul.addr %s238, 8
        %s240 = scalar_lea.vmem [#allocation8], %s239
        %v242 = vld [vmem:[#allocation2] sm:$0xf]
        %v243 = vld [vmem:[%s202] sm:$0xf]
        %v244 = vld [vmem:[%s202 + $0x4] sm:$0xf]
        %v245 = vld [vmem:[%s202 + $0x8] sm:$0xf]
        %v246 = vld [vmem:[%s202 + $0xc] sm:$0xf]
        %v251 = vunpack.c.l.b16 %v243
        %v252 = vunpack.c.l.b16 %v244
        %v253 = vunpack.c.l.b16 %v245
        %v254 = vunpack.c.l.b16 %v246
        %v255 = vpack.c.b16 %v252, %v251
        %v256 = vpack.c.b16 %v254, %v253
        %vm259 = vcmask 261120
        %v261 = vsel %vm259, %v242, 0
        %263 = vmatpush.bf16.msra.mxu0 0
        %264 = vmatpush.bf16.msra.mxu0 0
        %265 = vmatpush.bf16.msra.mxu0 0
        %266 = vmatpush.bf16.msra.mxu0 0
        %267 = vmatpush.bf16.msra.mxu0 0
        %268 = vmatpush.bf16.msra.mxu0 0
        %269 = vmatpush.bf16.msra.mxu0 %v256
        %270 = vmatpush.bf16.msra.mxu0 %v255
        %271 = vmatmul.bf16.gmra.mxu0 %v261
        %v272 = vpop.f32.mrf.mxu0
        %v273 = vadd.f32 0.0, %v272
        %v274 = vpop.f32.mrf.mxu0
        %275 = vdwg.mxu0
        %v276 = vrot.slane %v273, 4
        %v277 = vadd.f32 %v273, %v276
        %v278 = vrot.slane %v277, 2
        %v279 = vadd.f32 %v277, %v278
        %v280 = vrot.slane %v279, 1
        %v281 = vadd.f32 %v279, %v280
        %v282 = vmul.f32 %v281, 0.125
        %v283 = vmul.f32 %v273, %v273
        %v284 = vrot.slane %v283, 4
        %v285 = vadd.f32 %v283, %v284
        %v286 = vrot.slane %v285, 2
        %v287 = vadd.f32 %v285, %v286
        %v288 = vrot.slane %v287, 1
        %v289 = vadd.f32 %v287, %v288
        %v290 = vmul.f32 %v289, 0.125
        %v291 = vmul.f32 %v282, %v282
        %v292 = vsub.f32 %v290, %v291
        %v293 = vld [vmem:[%s212] sm:$0x1]
        %v294 = vld [vmem:[%s212 + $0x1] sm:$0x1]
        %v295 = vadd.f32 %v292, 1e-05
        %v296 = vrsqrt.pop %v295
        %v297 = vmul.f32 %v296, %v295
        %v298 = vmul.f32 %v297, %v296
        %v299 = vmul.f32 0.5, %v298
        %v300 = vsub.f32 1.5, %v299
        %v301 = vmul.f32 %v296, %v300
        %vm302 = vweird.f32 %v295
        %vm303 = vweird.f32 %v296
        %vm304 = vmor %vm302, %vm303
        %v305 = vsel %vm304, %v296, %v301
        %v306 = vmul.f32 %v293, %v305
        %v307 = vmul.f32 %v282, %v306
        %v308 = vsub.f32 %v294, %v307
        %v309 = vperm.slane %v306, 0
        %v310 = vmul.f32 %v273, %v309
        %v311 = vperm.slane %v308, 0
        %v312 = vadd.f32 %v310, %v311
        %v313 = vmul.f32 %v312, 0.5
        %v314 = vtanh.pop %v313
        %v315 = vmul.f32 %v314, 0.5
        %v316 = vadd.f32 %v315, 0.5
        %317 = vst [vmem:[%s240] sm:$0xff] %v316
        %s318 = sand.u32 %s102, 1
        %s319 = scalar_lea.sflag [#allocation4], %s318
        %s320 = sand.u32 %s102, 1
        %s321 = smul.addr %s320, 8
        %s322 = scalar_lea.vmem [#allocation8], %s321
        // Predicated region
        $region45: #{tpu_custom_call.1} parent=31 // pred_check
          %p323 = pneg %p112
        $region46: #{tpu_custom_call.1} parent=31 // pred_check_branch
          %325 = sbr.rel (%p323) target = $region48
        $region47: #{tpu_custom_call.1} parent=31 // pred_region
          %327 = vsyncadd %s319, 0
          %s328 = smul.addr %s21, 8
          %s329 = scalar_lea.hbm %s3, %s328
          %s331 = sshll.u32 %s322, 4
          %s332 = int_to_ptr.vmem [resolvable:$true] %s331
          %s333 = sshll.u32 %s329, 4
          %s334 = int_to_ptr.hbm [resolvable:$true] %s333
          %336 = dma.vmem_to_hbm [thread:$0]  %s332, 128, %s334, %s319
        $region48: #{tpu_custom_call.1} parent=31 // pred_fallthru
          _
      $region32: #{tpu_custom_call.1} parent=5 // pred_fallthru
        _
      %p337 = scmp.le.s32.totalorder 2, %s16
      // Predicated region
      $region49: #{tpu_custom_call.1} parent=5 // pred_check
        %p338 = pneg %p337
      $region50: #{tpu_custom_call.1} parent=5 // pred_check_branch
        %340 = sbr.rel (%p338) target = $region52
      $region51: #{tpu_custom_call.1} parent=5 // pred_region
        %s341 = ssub.s32 %s16, 2
        // Predicated region
        $region53: #{tpu_custom_call.1} parent=51 // pred_check
          %p342 = pneg %p118
        $region54: #{tpu_custom_call.1} parent=51 // pred_check_branch
          %344 = sbr.rel (%p342) target = $region56
        $region55: #{tpu_custom_call.1} parent=51 // pred_region
          %s345 = sand.u32 %s103, 1
          %s346 = scalar_lea.sflag [#allocation4], %s345
          %s347 = sand.u32 %s103, 1
          %s348 = smul.addr %s347, 8
          %s349 = scalar_lea.vmem [#allocation8], %s348
          %351 = dma.done %s346, 128
        $region56: #{tpu_custom_call.1} parent=51 // pred_fallthru
          _
      $region52: #{tpu_custom_call.1} parent=5 // pred_fallthru
        _
    $region6: #{tpu_custom_call.1} parent=1 // loop_footer
      %s20 = sadd.s32 1, %s16
    $region7: #{tpu_custom_call.1} parent=1 // loop_footer_branch
      %15 = sbr.rel target = $region3
    $region8: #{tpu_custom_call.1} parent=1 // loop_exit
      _
    %352 = vsyncpa [#allocation3], 1
    %s353 = scalar_lea.sflag [#allocation3], 1
    %354 = vsyncpa %s353, 1
    %355 = vsyncpa [#allocation6], 1
    %s356 = scalar_lea.sflag [#allocation6], 1
    %357 = vsyncpa %s356, 1
    %358 = vsyncpa [#allocation4], 1
    %s359 = scalar_lea.sflag [#allocation4], 1
    %360 = vsyncpa %s359, 1

</llo_original>
